<compile_context>
chip_gen: v7x
topology: tpu7x:2x2x1
jax: 0.10.0
libtpu: 0.0.40
codegen_flags: <defaults>
</compile_context>

<pallas_src>
import jax
import jax.numpy as jnp
import numpy as np
from jax.experimental import pallas as pl
from jax.experimental.pallas import tpu as pltpu

WIDTH = 64
FUSED = 2 * WIDTH          # 128: both MLP branches packed along sublanes
LAMBDA_A = 0.5             # args.lambda_a (synthetic, deterministic choice)
MAX_TILE = 4096            # batch elements (lanes) per grid step
LANE = 128


def _round_up(a, b):
    return (a + b - 1) // b * b


def _tiling(n):
    """Pick (tile, n_pad, grid).  Whole batch in one tile when it fits;
    otherwise an even number of equal tiles (keeps both v7x TCs busy)."""
    n_min = _round_up(max(n, 1), LANE)
    if n_min <= MAX_TILE:
        return n_min, n_min, 1
    grid = 2
    while _round_up(-(-n // grid), LANE) > MAX_TILE:
        grid += 2
    tile = _round_up(-(-n // grid), LANE)
    return tile, tile * grid, grid


def enc_inf_kernel(xin_ref, w1_ref, b1_ref, w3_ref, b3_ref, w5_ref, b5_ref,
                   v1_ref, loss_ref):
    xin = xin_ref[...]                       # [8, TILE] rows: BB,tgt,V2lbl,mask,0...
    labels = xin[1:3, :]                     # [2, TILE]  (target, V2 label)
    mask = xin[3:4, :]                       # [1, TILE]  1 = real row, 0 = batch pad

    # Fused fc1_1/fc1_2: one [128,8]@[8,TILE] bf16 MXU matmul (unused cols are 0).
    h = jnp.dot(w1_ref[...], xin.astype(jnp.bfloat16),
                preferred_element_type=jnp.float32) + b1_ref[...]
    h = jnp.maximum(h, 0.0)                                             # [128, TILE]

    # Fused fc3_1/fc3_2: one block-diagonal [128,128] bf16 MXU matmul.
    h = jnp.dot(w3_ref[...], h.astype(jnp.bfloat16),
                preferred_element_type=jnp.float32) + b3_ref[...]
    h = jnp.maximum(h, 0.0)                                             # [128, TILE]

    # Fused fc5_1/fc5_2: one [8,128]@[128,TILE] bf16 matmul; row0 -> v1, row1 -> v2.
    logits = jnp.dot(w5_ref[...], h.astype(jnp.bfloat16),
                     preferred_element_type=jnp.float32) + b5_ref[...]  # [8, TILE]

    sig = jax.nn.sigmoid(logits[0:2, :])                                # [2, TILE]
    v1 = sig[0:1, :]
    v2 = sig[1:2, :]
    # .detach() on v1_r is a no-op for the forward value.

    # Row 0: manual BCE with eps=1e-5 (loss1); row 1: nn.BCELoss (-100 log clamp).
    p_pos = jnp.concatenate([v1 + 1e-5, v2], axis=0)                    # [2, TILE]
    p_neg = jnp.concatenate([(1.0 - v1) + 1e-5, 1.0 - v2], axis=0)      # [2, TILE]
    log_pos = jnp.maximum(jnp.log(p_pos), -100.0)   # clamp is a no-op on row 0
    log_neg = jnp.maximum(jnp.log(p_neg), -100.0)
    # Clamp BEFORE the mask/label multiplies: avoids 0 * -inf NaNs when the
    # sigmoid saturates (matches torch BCELoss semantics).
    bce = mask * (-(labels * log_pos + (1.0 - labels) * log_neg))       # [2, TILE]

    v1_ref[...] = v1.reshape(1, 1, v1.shape[-1])                        # lane-dense
    loss_ref[...] = jnp.sum(bce, axis=1, keepdims=True).reshape(1, 2, 1)


def _fuse_params(params):
    """Pack the six Linear layers into the sublane-fused, batch-on-lanes layout."""
    # fc1: output features on sublanes (128), input channel on lanes (8, padded).
    # Input rows: 0=BB, 1=target, 2=V2 label, 3=mask, 4..7=0 (zero weights).
    w1 = jnp.zeros((FUSED, 8), jnp.float32)
    w1 = w1.at[:WIDTH, 0].set(params["w11"][0, :])    # branch 1: BB
    w1 = w1.at[WIDTH:, 0].set(params["w12"][1, :])    # branch 2: BB coefficient
    w1 = w1.at[WIDTH:, 1].set(params["w12"][0, :])    # branch 2: target coefficient
    b1 = jnp.concatenate([params["b11"], params["b12"]], axis=1).T          # [128,1]

    w3 = jnp.zeros((FUSED, FUSED), jnp.float32)
    w3 = w3.at[:WIDTH, :WIDTH].set(params["w31"].T)
    w3 = w3.at[WIDTH:, WIDTH:].set(params["w32"].T)
    b3 = jnp.concatenate([params["b31"], params["b32"]], axis=1).T          # [128,1]

    w5 = jnp.zeros((8, FUSED), jnp.float32)
    w5 = w5.at[0, :WIDTH].set(params["w51"][:, 0])
    w5 = w5.at[1, WIDTH:].set(params["w52"][:, 0])
    b5 = jnp.zeros((8, 1), jnp.float32)
    b5 = b5.at[0, 0].set(params["b51"][0, 0])
    b5 = b5.at[1, 0].set(params["b52"][0, 0])

    return (w1.astype(jnp.bfloat16), b1, w3.astype(jnp.bfloat16), b3,
            w5.astype(jnp.bfloat16), b5)


@jax.jit
def enc_inf_3_c(x, target, params):
    """Forward of Enc_inf_3_C: returns (v1_r [N,1], lambda_a*loss1 + loss2)."""
    n = x.shape[0]
    tile, n_pad, grid = _tiling(n)

    # Batch-on-lanes pack: [8, n_pad] rows = (BB, target, V2 label, mask, 0*4).
    cols = jnp.concatenate(
        [x[:, 0:1], target, x[:, 2:3], jnp.ones((n, 1), jnp.float32)], axis=1)
    packed = jnp.pad(cols.T.astype(jnp.float32), ((0, 4), (0, n_pad - n)))
    # TODO(synk): the tiny wrapper-side transpose/pad (n x 4 floats) could be
    # removed with scalar-prefetched n + in-kernel transpose, but it is
    # negligible HBM traffic compared to the layout win inside the kernel.

    w1, b1, w3, b3, w5, b5 = _fuse_params(params)

    def const(shape):
        return pl.BlockSpec(shape, lambda i: (0,) * len(shape))

    v1_blk, loss_blk = pl.pallas_call(
        enc_inf_kernel,
        out_shape=(jax.ShapeDtypeStruct((grid, 1, tile), jnp.float32),
                   jax.ShapeDtypeStruct((grid, 2, 1), jnp.float32)),
        grid=(grid,),
        in_specs=[
            pl.BlockSpec((8, tile), lambda i: (0, i)),   # packed batch columns
            const((FUSED, 8)),                           # w1 (fused, bf16)
            const((FUSED, 1)),                           # b1
            const((FUSED, FUSED)),                       # w3 (block-diag, bf16)
            const((FUSED, 1)),                           # b3
            const((8, FUSED)),                           # w5 (fused, bf16)
            const((8, 1)),                               # b5
        ],
        out_specs=(
            pl.BlockSpec((1, 1, tile), lambda i: (i, 0, 0)),   # v1 (lane-dense)
            pl.BlockSpec((1, 2, 1), lambda i: (i, 0, 0)),      # (loss1, loss2) sums
        ),
        compiler_params=pltpu.CompilerParams(
            dimension_semantics=("parallel",)),
    )(packed, w1, b1, w3, b3, w5, b5)

    v1 = v1_blk.reshape(n_pad, 1)[:n]
    loss = (LAMBDA_A * jnp.sum(loss_blk[:, 0, 0]) + jnp.sum(loss_blk[:, 1, 0])) / n
    return v1, loss


def init_params(key):
    """Deterministic torch-Linear-style init (uniform +-1/sqrt(fan_in)),
    weights stored transposed vs torch: [in_features, out_features]."""
    keys = jax.random.split(key, 12)

    def lin(kw, kb, fan_in, fan_out):
        bound = 1.0 / np.sqrt(fan_in)
        w = jax.random.uniform(kw, (fan_in, fan_out), jnp.float32, -bound, bound)
        b = jax.random.uniform(kb, (1, fan_out), jnp.float32, -bound, bound)
        return w, b

    p = {}
    p["w11"], p["b11"] = lin(keys[0], keys[1], 1, WIDTH)
    p["w31"], p["b31"] = lin(keys[2], keys[3], WIDTH, WIDTH)
    p["w51"], p["b51"] = lin(keys[4], keys[5], WIDTH, 1)
    p["w12"], p["b12"] = lin(keys[6], keys[7], 2, WIDTH)
    p["w32"], p["b32"] = lin(keys[8], keys[9], WIDTH, WIDTH)
    p["w52"], p["b52"] = lin(keys[10], keys[11], WIDTH, 1)
    return p


def reference_forward(x, target, params):
    """Plain-JAX f32 reference of the torch forward (for correctness check)."""
    bb = x[:, 0:1]
    v2_lbl = x[:, 2:3]
    h1 = jax.nn.relu(bb @ params["w11"] + params["b11"])
    h1 = jax.nn.relu(h1 @ params["w31"] + params["b31"])
    v1 = jax.nn.sigmoid(h1 @ params["w51"] + params["b51"])
    loss1 = jnp.sum(-target * jnp.log(v1 + 1e-5)
                    - (1.0 - target) * jnp.log(1.0 - v1 + 1e-5)) / x.shape[0]
    z = jnp.concatenate([target, bb], axis=1)
    h2 = jax.nn.relu(z @ params["w12"] + params["b12"])
    h2 = jax.nn.relu(h2 @ params["w32"] + params["b32"])
    v2 = jax.nn.sigmoid(h2 @ params["w52"] + params["b52"])
    loss2 = jnp.mean(-(v2_lbl * jnp.maximum(jnp.log(v2), -100.0)
                       + (1.0 - v2_lbl) * jnp.maximum(jnp.log(1.0 - v2), -100.0)))
    return v1, LAMBDA_A * loss1 + loss2


if __name__ == "__main__":
    key = jax.random.PRNGKey(0)
    k_params, k_x, k_t = jax.random.split(key, 3)
    params = init_params(k_params)

    def check(n, kx, kt):
        xx = jax.random.uniform(kx, (n, 3), jnp.float32)              # cols: BB, V1, V2
        tt = jnp.round(jax.random.uniform(kt, (n, 1), jnp.float32))   # {0,1} labels
        v1_k, loss_k = enc_inf_3_c(xx, tt, params)
        v1_k = jax.block_until_ready(v1_k)
        loss_k = jax.block_until_ready(loss_k)
        v1_r, loss_r = reference_forward(xx, tt, params)
        # tolerances account for bf16 MXU operands (f32 accumulation)
        np.testing.assert_allclose(np.asarray(v1_k), np.asarray(v1_r),
                                   rtol=2e-2, atol=2e-2)
        np.testing.assert_allclose(float(loss_k), float(loss_r),
                                   rtol=2e-2, atol=2e-2)

    # primary small case (single tile, lane padding + mask)
    check(8, k_x, k_t)
    # moderate case: whole batch in one tile
    k_x2, k_t2 = jax.random.split(jax.random.PRNGKey(1))
    check(2500, k_x2, k_t2)
    # large case: exercises even multi-tile grid ("parallel" axis) + pad masking
    k_x3, k_t3 = jax.random.split(jax.random.PRNGKey(2))
    check(10000, k_x3, k_t3)

    print("KERNEL_OK")
</pallas_src>

<mosaic_0001>
module attributes {stable_mosaic.version = 11 : i64} {
  func.func @enc_inf_kernel(%arg0: i32, %arg1: memref<8x128xf32, #tpu.memory_space<vmem>>, %arg2: memref<128x8xbf16, #tpu.memory_space<vmem>>, %arg3: memref<128x1xf32, #tpu.memory_space<vmem>>, %arg4: memref<128x128xbf16, #tpu.memory_space<vmem>>, %arg5: memref<128x1xf32, #tpu.memory_space<vmem>>, %arg6: memref<8x128xbf16, #tpu.memory_space<vmem>>, %arg7: memref<8x1xf32, #tpu.memory_space<vmem>>, %arg8: memref<1x1x128xf32, #tpu.memory_space<vmem>>, %arg9: memref<1x2x1xf32, #tpu.memory_space<vmem>>) attributes {dimension_semantics = [#tpu.dimension_semantics<parallel>], iteration_bounds = array<i64: 1>, scalar_prefetch = 0 : i64, scratch_operands = 0 : i64, tpu.core_type = #tpu.core_type<tc>, window_params = [{transform_indices = @transform_0, window_bounds = array<i64: 8, 128>}, {pipeline_mode = #tpu.pipeline_mode<synchronous>, transform_indices = @transform_1, window_bounds = array<i64: 128, 8>}, {pipeline_mode = #tpu.pipeline_mode<synchronous>, transform_indices = @transform_2, window_bounds = array<i64: 128, 1>}, {pipeline_mode = #tpu.pipeline_mode<synchronous>, transform_indices = @transform_3, window_bounds = array<i64: 128, 128>}, {pipeline_mode = #tpu.pipeline_mode<synchronous>, transform_indices = @transform_4, window_bounds = array<i64: 128, 1>}, {pipeline_mode = #tpu.pipeline_mode<synchronous>, transform_indices = @transform_5, window_bounds = array<i64: 8, 128>}, {pipeline_mode = #tpu.pipeline_mode<synchronous>, transform_indices = @transform_6, window_bounds = array<i64: 8, 1>}, {transform_indices = @transform_7, window_bounds = array<i64: 1, 1, 128>}, {transform_indices = @transform_8, window_bounds = array<i64: 1, 2, 1>}]} {
    %c0 = arith.constant 0 : index
    %c0_0 = arith.constant 0 : index
    %0 = vector.load %arg1[%c0, %c0_0] : memref<8x128xf32, #tpu.memory_space<vmem>>, vector<8x128xf32>
    %1 = vector.extract_strided_slice %0 {offsets = [1, 0], sizes = [2, 128], strides = [1, 1]} : vector<8x128xf32> to vector<2x128xf32>
    %2 = vector.extract_strided_slice %0 {offsets = [3, 0], sizes = [1, 128], strides = [1, 1]} : vector<8x128xf32> to vector<1x128xf32>
    %c0_1 = arith.constant 0 : index
    %c0_2 = arith.constant 0 : index
    %3 = vector.load %arg2[%c0_1, %c0_2] : memref<128x8xbf16, #tpu.memory_space<vmem>>, vector<128x8xbf16>
    %4 = arith.truncf %0 : vector<8x128xf32> to vector<8x128xbf16>
    %cst = arith.constant dense<0.000000e+00> : vector<128x128xf32>
    %5 = tpu.matmul %3, %4, %cst {dimension_numbers = #tpu.dot_dimension_numbers<[1], [0], [0], [1], [0, 0, 1, 1], [], []>} : vector<128x8xbf16>, vector<8x128xbf16>, vector<128x128xf32> -> vector<128x128xf32>
    %c0_3 = arith.constant 0 : index
    %c0_4 = arith.constant 0 : index
    %6 = vector.load %arg3[%c0_3, %c0_4] : memref<128x1xf32, #tpu.memory_space<vmem>>, vector<128x1xf32>
    %7 = vector.broadcast %6 : vector<128x1xf32> to vector<128x128xf32>
    %8 = arith.addf %5, %7 : vector<128x128xf32>
    %cst_5 = arith.constant 0.000000e+00 : f32
    %9 = vector.broadcast %cst_5 : f32 to vector<128x128xf32>
    %10 = arith.maximumf %8, %9 : vector<128x128xf32>
    %c0_6 = arith.constant 0 : index
    %c0_7 = arith.constant 0 : index
    %11 = vector.load %arg4[%c0_6, %c0_7] : memref<128x128xbf16, #tpu.memory_space<vmem>>, vector<128x128xbf16>
    %12 = arith.truncf %10 : vector<128x128xf32> to vector<128x128xbf16>
    %cst_8 = arith.constant dense<0.000000e+00> : vector<128x128xf32>
    %13 = tpu.matmul %11, %12, %cst_8 {dimension_numbers = #tpu.dot_dimension_numbers<[1], [0], [0], [1], [0, 0, 1, 1], [], []>} : vector<128x128xbf16>, vector<128x128xbf16>, vector<128x128xf32> -> vector<128x128xf32>
    %c0_9 = arith.constant 0 : index
    %c0_10 = arith.constant 0 : index
    %14 = vector.load %arg5[%c0_9, %c0_10] : memref<128x1xf32, #tpu.memory_space<vmem>>, vector<128x1xf32>
    %15 = vector.broadcast %14 : vector<128x1xf32> to vector<128x128xf32>
    %16 = arith.addf %13, %15 : vector<128x128xf32>
    %cst_11 = arith.constant 0.000000e+00 : f32
    %17 = vector.broadcast %cst_11 : f32 to vector<128x128xf32>
    %18 = arith.maximumf %16, %17 : vector<128x128xf32>
    %c0_12 = arith.constant 0 : index
    %c0_13 = arith.constant 0 : index
    %19 = vector.load %arg6[%c0_12, %c0_13] : memref<8x128xbf16, #tpu.memory_space<vmem>>, vector<8x128xbf16>
    %20 = arith.truncf %18 : vector<128x128xf32> to vector<128x128xbf16>
    %cst_14 = arith.constant dense<0.000000e+00> : vector<8x128xf32>
    %21 = tpu.matmul %19, %20, %cst_14 {dimension_numbers = #tpu.dot_dimension_numbers<[1], [0], [0], [1], [0, 0, 1, 1], [], []>} : vector<8x128xbf16>, vector<128x128xbf16>, vector<8x128xf32> -> vector<8x128xf32>
    %c0_15 = arith.constant 0 : index
    %c0_16 = arith.constant 0 : index
    %22 = vector.load %arg7[%c0_15, %c0_16] : memref<8x1xf32, #tpu.memory_space<vmem>>, vector<8x1xf32>
    %23 = vector.broadcast %22 : vector<8x1xf32> to vector<8x128xf32>
    %24 = arith.addf %21, %23 : vector<8x128xf32>
    %25 = vector.extract_strided_slice %24 {offsets = [0, 0], sizes = [2, 128], strides = [1, 1]} : vector<8x128xf32> to vector<2x128xf32>
    %26 = arith.negf %25 : vector<2x128xf32>
    %27 = math.exp %26 : vector<2x128xf32>
    %cst_17 = arith.constant 1.000000e+00 : f32
    %28 = vector.broadcast %cst_17 : f32 to vector<2x128xf32>
    %29 = arith.addf %28, %27 : vector<2x128xf32>
    %30 = arith.divf %28, %29 : vector<2x128xf32>
    %31 = vector.extract_strided_slice %30 {offsets = [0, 0], sizes = [1, 128], strides = [1, 1]} : vector<2x128xf32> to vector<1x128xf32>
    %32 = vector.extract_strided_slice %30 {offsets = [1, 0], sizes = [1, 128], strides = [1, 1]} : vector<2x128xf32> to vector<1x128xf32>
    %cst_18 = arith.constant 9.99999974E-6 : f32
    %33 = vector.broadcast %cst_18 : f32 to vector<1x128xf32>
    %34 = arith.addf %31, %33 : vector<1x128xf32>
    %35 = tpu.concatenate %34, %32 in 0 : vector<1x128xf32>, vector<1x128xf32> -> vector<2x128xf32>
    %cst_19 = arith.constant 1.000000e+00 : f32
    %36 = vector.broadcast %cst_19 : f32 to vector<1x128xf32>
    %37 = arith.subf %36, %31 : vector<1x128xf32>
    %cst_20 = arith.constant 9.99999974E-6 : f32
    %38 = vector.broadcast %cst_20 : f32 to vector<1x128xf32>
    %39 = arith.addf %37, %38 : vector<1x128xf32>
    %cst_21 = arith.constant 1.000000e+00 : f32
    %40 = vector.broadcast %cst_21 : f32 to vector<1x128xf32>
    %41 = arith.subf %40, %32 : vector<1x128xf32>
    %42 = tpu.concatenate %39, %41 in 0 : vector<1x128xf32>, vector<1x128xf32> -> vector<2x128xf32>
    %43 = math.log %35 : vector<2x128xf32>
    %cst_22 = arith.constant -1.000000e+02 : f32
    %44 = vector.broadcast %cst_22 : f32 to vector<2x128xf32>
    %45 = arith.maximumf %43, %44 : vector<2x128xf32>
    %46 = math.log %42 : vector<2x128xf32>
    %cst_23 = arith.constant -1.000000e+02 : f32
    %47 = vector.broadcast %cst_23 : f32 to vector<2x128xf32>
    %48 = arith.maximumf %46, %47 : vector<2x128xf32>
    %49 = arith.mulf %1, %45 : vector<2x128xf32>
    %cst_24 = arith.constant 1.000000e+00 : f32
    %50 = vector.broadcast %cst_24 : f32 to vector<2x128xf32>
    %51 = arith.subf %50, %1 : vector<2x128xf32>
    %52 = arith.mulf %51, %48 : vector<2x128xf32>
    %53 = arith.addf %49, %52 : vector<2x128xf32>
    %cst_25 = arith.constant 0.000000e+00 : f32
    %54 = vector.broadcast %cst_25 : f32 to vector<2x128xf32>
    %55 = arith.subf %54, %53 : vector<2x128xf32>
    %56 = vector.broadcast %2 : vector<1x128xf32> to vector<2x128xf32>
    %57 = arith.mulf %56, %55 : vector<2x128xf32>
    %58 = vector.shape_cast %31 : vector<1x128xf32> to vector<1x1x128xf32>
    %c0_26 = arith.constant 0 : index
    %c0_27 = arith.constant 0 : index
    %c0_28 = arith.constant 0 : index
    %59 = vector.load %arg8[%c0_26, %c0_27, %c0_28] : memref<1x1x128xf32, #tpu.memory_space<vmem>>, vector<1x1x128xf32>
    tpu.vector_store %arg8[%c0_26, %c0_27, %c0_28], %58 {strides = array<i32>} : memref<1x1x128xf32, #tpu.memory_space<vmem>>, vector<1x1x128xf32>,
    %cst_29 = arith.constant dense<0.000000e+00> : vector<2xf32>
    %60 = vector.multi_reduction <add>, %57, %cst_29 [1] : vector<2x128xf32> to vector<2xf32>
    %61 = vector.shape_cast %60 : vector<2xf32> to vector<2x1xf32>
    %62 = vector.shape_cast %61 : vector<2x1xf32> to vector<1x2x1xf32>
    %c0_30 = arith.constant 0 : index
    %c0_31 = arith.constant 0 : index
    %c0_32 = arith.constant 0 : index
    %63 = vector.load %arg9[%c0_30, %c0_31, %c0_32] : memref<1x2x1xf32, #tpu.memory_space<vmem>>, vector<1x2x1xf32>
    tpu.vector_store %arg9[%c0_30, %c0_31, %c0_32], %62 {strides = array<i32>} : memref<1x2x1xf32, #tpu.memory_space<vmem>>, vector<1x2x1xf32>,
    return
  }
  func.func @transform_0(%arg0: i32) -> (i32, i32) {
    %c0_i32 = arith.constant 0 : i32
    %c0_i32_0 = arith.constant 0 : i32
    return %c0_i32, %arg0 : i32, i32
  }
  func.func @transform_1(%arg0: i32) -> (i32, i32) {
    %c0_i32 = arith.constant 0 : i32
    %c0_i32_0 = arith.constant 0 : i32
    %c0_i32_1 = arith.constant 0 : i32
    return %c0_i32, %c0_i32_0 : i32, i32
  }
  func.func @transform_2(%arg0: i32) -> (i32, i32) {
    %c0_i32 = arith.constant 0 : i32
    %c0_i32_0 = arith.constant 0 : i32
    %c0_i32_1 = arith.constant 0 : i32
    return %c0_i32, %c0_i32_0 : i32, i32
  }
  func.func @transform_3(%arg0: i32) -> (i32, i32) {
    %c0_i32 = arith.constant 0 : i32
    %c0_i32_0 = arith.constant 0 : i32
    %c0_i32_1 = arith.constant 0 : i32
    return %c0_i32, %c0_i32_0 : i32, i32
  }
  func.func @transform_4(%arg0: i32) -> (i32, i32) {
    %c0_i32 = arith.constant 0 : i32
    %c0_i32_0 = arith.constant 0 : i32
    %c0_i32_1 = arith.constant 0 : i32
    return %c0_i32, %c0_i32_0 : i32, i32
  }
  func.func @transform_5(%arg0: i32) -> (i32, i32) {
    %c0_i32 = arith.constant 0 : i32
    %c0_i32_0 = arith.constant 0 : i32
    %c0_i32_1 = arith.constant 0 : i32
    return %c0_i32, %c0_i32_0 : i32, i32
  }
  func.func @transform_6(%arg0: i32) -> (i32, i32) {
    %c0_i32 = arith.constant 0 : i32
    %c0_i32_0 = arith.constant 0 : i32
    %c0_i32_1 = arith.constant 0 : i32
    return %c0_i32, %c0_i32_0 : i32, i32
  }
  func.func @transform_7(%arg0: i32) -> (i32, i32, i32) {
    %c0_i32 = arith.constant 0 : i32
    %c0_i32_0 = arith.constant 0 : i32
    %c0_i32_1 = arith.constant 0 : i32
    return %arg0, %c0_i32, %c0_i32_0 : i32, i32, i32
  }
  func.func @transform_8(%arg0: i32) -> (i32, i32, i32) {
    %c0_i32 = arith.constant 0 : i32
    %c0_i32_0 = arith.constant 0 : i32
    %c0_i32_1 = arith.constant 0 : i32
    return %arg0, %c0_i32, %c0_i32_0 : i32, i32, i32
  }
}

</mosaic_0001>

<llo_original>
// kernel: enc_inf_3_c.1
$region0: #{enc_inf_3_c.1}
  #allocation0 [shape = 'u32[]', space=smem, size = 0x4, offset = 0x4, fixed_abs, tag = 'smem constant byte address 0x4 - core index']
  #allocation1 [shape = 'u32[144,128]{1,0:T(1,128)}', space=vmem, size = 0x12000, scoped, tag = 'internal scratch']
  %s0 = inlined_call_operand.vmem [shape: f32[8,128], index: 0, kind: input, shape index: {}]
  %s1 = inlined_call_operand.vmem [shape: bf16[128,8], index: 1, kind: input, shape index: {}]
  %s2 = inlined_call_operand.vmem [shape: f32[128,1], index: 2, kind: input, shape index: {}]
  %s3 = inlined_call_operand.vmem [shape: bf16[128,128], index: 3, kind: input, shape index: {}]
  %s4 = inlined_call_operand.vmem [shape: f32[128,1], index: 4, kind: input, shape index: {}]
  %s5 = inlined_call_operand.vmem [shape: bf16[8,128], index: 5, kind: input, shape index: {}]
  %s6 = inlined_call_operand.vmem [shape: f32[8,1], index: 6, kind: input, shape index: {}]
  %s7 = inlined_call_operand.vmem [shape: f32[1,1,128], index: 7, kind: output, shape index: {0}]
  %s8 = inlined_call_operand.vmem [shape: f32[1,2,1], index: 8, kind: output, shape index: {1}]
  %9 = xla_tuple %s7, %s8
  %s10 = sld [smem:[#allocation0]]
  $region46: #{enc_inf_3_c.1} parent=0
    _
  %s12 = ssub.s32 1, %s10
  %s13 = scalar_select 0, %s12, %s10
  // Predicated region
  $region2: #{enc_inf_3_c.1} parent=0 // pred_check
    _
  $region3: #{enc_inf_3_c.1} parent=0 // pred_check_branch
    %15 = sbr.rel (0) target = $region5
  $region4: #{enc_inf_3_c.1} parent=0 // pred_region
    _
  $region5: #{enc_inf_3_c.1} parent=0 // pred_fallthru
    _
  // Predicated region
  $region6: #{enc_inf_3_c.1} parent=0 // pred_check
    _
  $region7: #{enc_inf_3_c.1} parent=0 // pred_check_branch
    %17 = sbr.rel (0) target = $region9
  $region8: #{enc_inf_3_c.1} parent=0 // pred_region
    _
  $region9: #{enc_inf_3_c.1} parent=0 // pred_fallthru
    _
  // Predicated region
  $region10: #{enc_inf_3_c.1} parent=0 // pred_check
    _
  $region11: #{enc_inf_3_c.1} parent=0 // pred_check_branch
    %19 = sbr.rel (0) target = $region13
  $region12: #{enc_inf_3_c.1} parent=0 // pred_region
    _
  $region13: #{enc_inf_3_c.1} parent=0 // pred_fallthru
    _
  // Predicated region
  $region14: #{enc_inf_3_c.1} parent=0 // pred_check
    _
  $region15: #{enc_inf_3_c.1} parent=0 // pred_check_branch
    %21 = sbr.rel (0) target = $region17
  $region16: #{enc_inf_3_c.1} parent=0 // pred_region
    _
  $region17: #{enc_inf_3_c.1} parent=0 // pred_fallthru
    _
  // Predicated region
  $region18: #{enc_inf_3_c.1} parent=0 // pred_check
    _
  $region19: #{enc_inf_3_c.1} parent=0 // pred_check_branch
    %23 = sbr.rel (0) target = $region21
  $region20: #{enc_inf_3_c.1} parent=0 // pred_region
    _
  $region21: #{enc_inf_3_c.1} parent=0 // pred_fallthru
    _
  // Predicated region
  $region22: #{enc_inf_3_c.1} parent=0 // pred_check
    _
  $region23: #{enc_inf_3_c.1} parent=0 // pred_check_branch
    %25 = sbr.rel (0) target = $region25
  $region24: #{enc_inf_3_c.1} parent=0 // pred_region
    _
  $region25: #{enc_inf_3_c.1} parent=0 // pred_fallthru
    _
  // Predicated region
  $region26: #{enc_inf_3_c.1} parent=0 // pred_check
    _
  $region27: #{enc_inf_3_c.1} parent=0 // pred_check_branch
    %27 = sbr.rel (0) target = $region29
  $region28: #{enc_inf_3_c.1} parent=0 // pred_region
    _
  $region29: #{enc_inf_3_c.1} parent=0 // pred_fallthru
    _
  %v29 = vld [vmem:[%s0] sm:$0xff]
  %v30 = vld [vmem:[%s1] sm:$0xf]
  %v31 = vld [vmem:[%s1 + $0x4] sm:$0xf]
  %v32 = vld [vmem:[%s1 + $0x8] sm:$0xf]
  %v33 = vld [vmem:[%s1 + $0xc] sm:$0xf]
  %v34 = vld [vmem:[%s1 + $0x10] sm:$0xf]
  %v35 = vld [vmem:[%s1 + $0x14] sm:$0xf]
  %v36 = vld [vmem:[%s1 + $0x18] sm:$0xf]
  %v37 = vld [vmem:[%s1 + $0x1c] sm:$0xf]
  %v38 = vld [vmem:[%s1 + $0x20] sm:$0xf]
  %v39 = vld [vmem:[%s1 + $0x24] sm:$0xf]
  %v40 = vld [vmem:[%s1 + $0x28] sm:$0xf]
  %v41 = vld [vmem:[%s1 + $0x2c] sm:$0xf]
  %v42 = vld [vmem:[%s1 + $0x30] sm:$0xf]
  %v43 = vld [vmem:[%s1 + $0x34] sm:$0xf]
  %v44 = vld [vmem:[%s1 + $0x38] sm:$0xf]
  %v45 = vld [vmem:[%s1 + $0x3c] sm:$0xf]
  %v46 = vpack.c.bf16 %v29, %v29
  %v47 = vld [vmem:[%s2] sm:$0xff]
  %v48 = vld [vmem:[%s2 + $0x8] sm:$0xff]
  %v49 = vld [vmem:[%s2 + $0x10] sm:$0xff]
  %v50 = vld [vmem:[%s2 + $0x18] sm:$0xff]
  %v51 = vld [vmem:[%s2 + $0x20] sm:$0xff]
  %v52 = vld [vmem:[%s2 + $0x28] sm:$0xff]
  %v53 = vld [vmem:[%s2 + $0x30] sm:$0xff]
  %v54 = vld [vmem:[%s2 + $0x38] sm:$0xff]
  %v55 = vld [vmem:[%s2 + $0x40] sm:$0xff]
  %v56 = vld [vmem:[%s2 + $0x48] sm:$0xff]
  %v57 = vld [vmem:[%s2 + $0x50] sm:$0xff]
  %v58 = vld [vmem:[%s2 + $0x58] sm:$0xff]
  %v59 = vld [vmem:[%s2 + $0x60] sm:$0xff]
  %v60 = vld [vmem:[%s2 + $0x68] sm:$0xff]
  %v61 = vld [vmem:[%s2 + $0x70] sm:$0xff]
  %v62 = vld [vmem:[%s2 + $0x78] sm:$0xff]
  %64 = vset.pattern.permute.xlu0 0
  %65 = vperm.xlu0 %64, %v47
  %v66 = vpop.permute.xlu0 %65
  %69 = vset.pattern.permute.xlu0 0
  %70 = vperm.xlu0 %69, %v48
  %v71 = vpop.permute.xlu0 %70
  %74 = vset.pattern.permute.xlu0 0
  %75 = vperm.xlu0 %74, %v49
  %v76 = vpop.permute.xlu0 %75
  %79 = vset.pattern.permute.xlu0 0
  %80 = vperm.xlu0 %79, %v50
  %v81 = vpop.permute.xlu0 %80
  %84 = vset.pattern.permute.xlu0 0
  %85 = vperm.xlu0 %84, %v51
  %v86 = vpop.permute.xlu0 %85
  %89 = vset.pattern.permute.xlu0 0
  %90 = vperm.xlu0 %89, %v52
  %v91 = vpop.permute.xlu0 %90
  %94 = vset.pattern.permute.xlu0 0
  %95 = vperm.xlu0 %94, %v53
  %v96 = vpop.permute.xlu0 %95
  %99 = vset.pattern.permute.xlu0 0
  %100 = vperm.xlu0 %99, %v54
  %v101 = vpop.permute.xlu0 %100
  %104 = vset.pattern.permute.xlu0 0
  %105 = vperm.xlu0 %104, %v55
  %v106 = vpop.permute.xlu0 %105
  %109 = vset.pattern.permute.xlu0 0
  %110 = vperm.xlu0 %109, %v56
  %v111 = vpop.permute.xlu0 %110
  %114 = vset.pattern.permute.xlu0 0
  %115 = vperm.xlu0 %114, %v57
  %v116 = vpop.permute.xlu0 %115
  %119 = vset.pattern.permute.xlu0 0
  %120 = vperm.xlu0 %119, %v58
  %v121 = vpop.permute.xlu0 %120
  %124 = vset.pattern.permute.xlu0 0
  %125 = vperm.xlu0 %124, %v59
  %v126 = vpop.permute.xlu0 %125
  %129 = vset.pattern.permute.xlu0 0
  %130 = vperm.xlu0 %129, %v60
  %v131 = vpop.permute.xlu0 %130
  %134 = vset.pattern.permute.xlu0 0
  %135 = vperm.xlu0 %134, %v61
  %v136 = vpop.permute.xlu0 %135
  %139 = vset.pattern.permute.xlu0 0
  %140 = vperm.xlu0 %139, %v62
  %v141 = vpop.permute.xlu0 %140
  %v159 = vunpack.c.l.b16 %v30
  %v160 = vunpack.c.l.b16 %v31
  %v161 = vunpack.c.l.b16 %v32
  %v162 = vunpack.c.l.b16 %v33
  %v163 = vunpack.c.l.b16 %v34
  %v164 = vunpack.c.l.b16 %v35
  %v165 = vunpack.c.l.b16 %v36
  %v166 = vunpack.c.l.b16 %v37
  %v167 = vunpack.c.l.b16 %v38
  %v168 = vunpack.c.l.b16 %v39
  %v169 = vunpack.c.l.b16 %v40
  %v170 = vunpack.c.l.b16 %v41
  %v171 = vunpack.c.l.b16 %v42
  %v172 = vunpack.c.l.b16 %v43
  %v173 = vunpack.c.l.b16 %v44
  %v174 = vunpack.c.l.b16 %v45
  %v175 = vpack.c.b16 %v160, %v159
  %v176 = vpack.c.b16 %v162, %v161
  %v177 = vpack.c.b16 %v164, %v163
  %v178 = vpack.c.b16 %v166, %v165
  %v179 = vpack.c.b16 %v168, %v167
  %v180 = vpack.c.b16 %v170, %v169
  %v181 = vpack.c.b16 %v172, %v171
  %v182 = vpack.c.b16 %v174, %v173
  %vm183 = vcmask 64512
  %v185 = vsel %vm183, %v175, 0
  %v188 = vsel %vm183, %v176, 0
  %v191 = vsel %vm183, %v177, 0
  %v194 = vsel %vm183, %v178, 0
  %v197 = vsel %vm183, %v179, 0
  %v200 = vsel %vm183, %v180, 0
  %v203 = vsel %vm183, %v181, 0
  %v206 = vsel %vm183, %v182, 0
  %vm208 = vcmask 1043456
  %v210 = vsel %vm208, %v46, 0
  %212 = vmatprep.subr.bf16.mxu0 0
  %213 = vmatpush1.bf16.msra.mxu0 %v210
  %214 = vmatprep.subr.bf16.mxu0 0
  %215 = vmatpush1.bf16.msra.mxu0 0
  %216 = vmatprep.subr.bf16.mxu0 0
  %217 = vmatpush1.bf16.msra.mxu0 0
  %218 = vmatprep.subr.bf16.mxu0 0
  %219 = vmatpush1.bf16.msra.mxu0 0
  %220 = vmatprep.subr.bf16.mxu0 0
  %221 = vmatpush1.bf16.msra.mxu0 0
  %222 = vmatprep.subr.bf16.mxu0 0
  %223 = vmatpush1.bf16.msra.mxu0 0
  %224 = vmatprep.subr.bf16.mxu0 0
  %225 = vmatpush1.bf16.msra.mxu0 0
  %226 = vmatprep.subr.bf16.mxu0 0
  %227 = vmatpush1.bf16.msra.mxu0 0
  %228 = vmatprep.subr.bf16.mxu0 0
  %229 = vmatpush1.bf16.msra.mxu0 0
  %230 = vmatprep.subr.bf16.mxu0 0
  %231 = vmatpush1.bf16.msra.mxu0 0
  %232 = vmatprep.subr.bf16.mxu0 0
  %233 = vmatpush1.bf16.msra.mxu0 0
  %234 = vmatprep.subr.bf16.mxu0 0
  %235 = vmatpush1.bf16.msra.mxu0 0
  %236 = vmatprep.subr.bf16.mxu0 0
  %237 = vmatpush1.bf16.msra.mxu0 0
  %238 = vmatprep.subr.bf16.mxu0 0
  %239 = vmatpush1.bf16.msra.mxu0 0
  %240 = vmatprep.subr.bf16.mxu0 0
  %241 = vmatpush1.bf16.msra.mxu0 0
  %242 = vmatprep.subr.bf16.mxu0 0
  %243 = vmatpush1.bf16.msra.mxu0 0
  %244 = vmatprep.mubr.bf16.mxu0 0
  %245 = vmatmul.mubr.bf16.gmra.mrb[0].mxu0 %v185
  %v246 = vpop.f32.mrb[0].mxu0
  %v247 = vadd.f32 %v66, %v246
  %v248 = vpop.f32.mrb[0].mxu0
  %v249 = vpop.f32.mrb[0].mxu0
  %v250 = vadd.f32 %v71, %v249
  %v251 = vpop.f32.mrb[0].mxu0
  %252 = vmatprep.mubr.bf16.mxu0 0
  %253 = vmatmul.mubr.bf16.gmra.mrb[0].mxu0 %v188
  %v254 = vpop.f32.mrb[0].mxu0
  %v255 = vadd.f32 %v76, %v254
  %v256 = vpop.f32.mrb[0].mxu0
  %v257 = vpop.f32.mrb[0].mxu0
  %v258 = vadd.f32 %v81, %v257
  %v259 = vpop.f32.mrb[0].mxu0
  %260 = vmatprep.mubr.bf16.mxu0 0
  %261 = vmatmul.mubr.bf16.gmra.mrb[0].mxu0 %v191
  %v262 = vpop.f32.mrb[0].mxu0
  %v263 = vadd.f32 %v86, %v262
  %v264 = vpop.f32.mrb[0].mxu0
  %v265 = vpop.f32.mrb[0].mxu0
  %v266 = vadd.f32 %v91, %v265
  %v267 = vpop.f32.mrb[0].mxu0
  %268 = vmatprep.mubr.bf16.mxu0 0
  %269 = vmatmul.mubr.bf16.gmra.mrb[0].mxu0 %v194
  %v270 = vpop.f32.mrb[0].mxu0
  %v271 = vadd.f32 %v96, %v270
  %v272 = vpop.f32.mrb[0].mxu0
  %v273 = vpop.f32.mrb[0].mxu0
  %v274 = vadd.f32 %v101, %v273
  %v275 = vpop.f32.mrb[0].mxu0
  %276 = vmatprep.mubr.bf16.mxu0 0
  %277 = vmatmul.mubr.bf16.gmra.mrb[0].mxu0 %v197
  %v278 = vpop.f32.mrb[0].mxu0
  %v279 = vadd.f32 %v106, %v278
  %v280 = vpop.f32.mrb[0].mxu0
  %v281 = vpop.f32.mrb[0].mxu0
  %v282 = vadd.f32 %v111, %v281
  %v283 = vpop.f32.mrb[0].mxu0
  %284 = vmatprep.mubr.bf16.mxu0 0
  %285 = vmatmul.mubr.bf16.gmra.mrb[0].mxu0 %v200
  %v286 = vpop.f32.mrb[0].mxu0
  %v287 = vadd.f32 %v116, %v286
  %v288 = vpop.f32.mrb[0].mxu0
  %v289 = vpop.f32.mrb[0].mxu0
  %v290 = vadd.f32 %v121, %v289
  %v291 = vpop.f32.mrb[0].mxu0
  %292 = vmatprep.mubr.bf16.mxu0 0
  %293 = vmatmul.mubr.bf16.gmra.mrb[0].mxu0 %v203
  %v294 = vpop.f32.mrb[0].mxu0
  %v295 = vadd.f32 %v126, %v294
  %v296 = vpop.f32.mrb[0].mxu0
  %v297 = vpop.f32.mrb[0].mxu0
  %v298 = vadd.f32 %v131, %v297
  %v299 = vpop.f32.mrb[0].mxu0
  %300 = vmatprep.mubr.bf16.mxu0 0
  %301 = vmatmul.mubr.bf16.gmra.mrb[0].mxu0 %v206
  %v302 = vpop.f32.mrb[0].mxu0
  %v303 = vadd.f32 %v136, %v302
  %v304 = vpop.f32.mrb[0].mxu0
  %v305 = vpop.f32.mrb[0].mxu0
  %v306 = vadd.f32 %v141, %v305
  %v307 = vpop.f32.mrb[0].mxu0
  %308 = vdwg.mxu0
  %v309 = vmax.f32 %v247, 0.0
  %v310 = vmax.f32 %v250, 0.0
  %v311 = vmax.f32 %v255, 0.0
  %v312 = vmax.f32 %v258, 0.0
  %v313 = vmax.f32 %v263, 0.0
  %v314 = vmax.f32 %v266, 0.0
  %v315 = vmax.f32 %v271, 0.0
  %v316 = vmax.f32 %v274, 0.0
  %v317 = vmax.f32 %v279, 0.0
  %v318 = vmax.f32 %v282, 0.0
  %v319 = vmax.f32 %v287, 0.0
  %v320 = vmax.f32 %v290, 0.0
  %v321 = vmax.f32 %v295, 0.0
  %v322 = vmax.f32 %v298, 0.0
  %v323 = vmax.f32 %v303, 0.0
  %v324 = vmax.f32 %v306, 0.0
  %v325 = vld [vmem:[%s3] sm:$0xf]
  %v326 = vld [vmem:[%s3 + $0x4] sm:$0xf]
  %v327 = vld [vmem:[%s3 + $0x8] sm:$0xf]
  %v328 = vld [vmem:[%s3 + $0xc] sm:$0xf]
  %v329 = vld [vmem:[%s3 + $0x10] sm:$0xf]
  %v330 = vld [vmem:[%s3 + $0x14] sm:$0xf]
  %v331 = vld [vmem:[%s3 + $0x18] sm:$0xf]
  %v332 = vld [vmem:[%s3 + $0x1c] sm:$0xf]
  %v333 = vld [vmem:[%s3 + $0x20] sm:$0xf]
  %v334 = vld [vmem:[%s3 + $0x24] sm:$0xf]
  %v335 = vld [vmem:[%s3 + $0x28] sm:$0xf]
  %v336 = vld [vmem:[%s3 + $0x2c] sm:$0xf]
  %v337 = vld [vmem:[%s3 + $0x30] sm:$0xf]
  %v338 = vld [vmem:[%s3 + $0x34] sm:$0xf]
  %v339 = vld [vmem:[%s3 + $0x38] sm:$0xf]
  %v340 = vld [vmem:[%s3 + $0x3c] sm:$0xf]
  %v341 = vpack.c.bf16 %v310, %v309
  %v342 = vpack.c.bf16 %v312, %v311
  %v343 = vpack.c.bf16 %v314, %v313
  %v344 = vpack.c.bf16 %v316, %v315
  %v345 = vpack.c.bf16 %v318, %v317
  %v346 = vpack.c.bf16 %v320, %v319
  %v347 = vpack.c.bf16 %v322, %v321
  %v348 = vpack.c.bf16 %v324, %v323
  %v349 = vld [vmem:[%s4] sm:$0xff]
  %v350 = vld [vmem:[%s4 + $0x8] sm:$0xff]
  %v351 = vld [vmem:[%s4 + $0x10] sm:$0xff]
  %v352 = vld [vmem:[%s4 + $0x18] sm:$0xff]
  %v353 = vld [vmem:[%s4 + $0x20] sm:$0xff]
  %v354 = vld [vmem:[%s4 + $0x28] sm:$0xff]
  %v355 = vld [vmem:[%s4 + $0x30] sm:$0xff]
  %v356 = vld [vmem:[%s4 + $0x38] sm:$0xff]
  %v357 = vld [vmem:[%s4 + $0x40] sm:$0xff]
  %v358 = vld [vmem:[%s4 + $0x48] sm:$0xff]
  %v359 = vld [vmem:[%s4 + $0x50] sm:$0xff]
  %v360 = vld [vmem:[%s4 + $0x58] sm:$0xff]
  %v361 = vld [vmem:[%s4 + $0x60] sm:$0xff]
  %v362 = vld [vmem:[%s4 + $0x68] sm:$0xff]
  %v363 = vld [vmem:[%s4 + $0x70] sm:$0xff]
  %v364 = vld [vmem:[%s4 + $0x78] sm:$0xff]
  %366 = vset.pattern.permute.xlu0 0
  %367 = vperm.xlu0 %366, %v349
  %v368 = vpop.permute.xlu0 %367
  %371 = vset.pattern.permute.xlu0 0
  %372 = vperm.xlu0 %371, %v350
  %v373 = vpop.permute.xlu0 %372
  %376 = vset.pattern.permute.xlu0 0
  %377 = vperm.xlu0 %376, %v351
  %v378 = vpop.permute.xlu0 %377
  %381 = vset.pattern.permute.xlu0 0
  %382 = vperm.xlu0 %381, %v352
  %v383 = vpop.permute.xlu0 %382
  %386 = vset.pattern.permute.xlu0 0
  %387 = vperm.xlu0 %386, %v353
  %v388 = vpop.permute.xlu0 %387
  %391 = vset.pattern.permute.xlu0 0
  %392 = vperm.xlu0 %391, %v354
  %v393 = vpop.permute.xlu0 %392
  %396 = vset.pattern.permute.xlu0 0
  %397 = vperm.xlu0 %396, %v355
  %v398 = vpop.permute.xlu0 %397
  %401 = vset.pattern.permute.xlu0 0
  %402 = vperm.xlu0 %401, %v356
  %v403 = vpop.permute.xlu0 %402
  %406 = vset.pattern.permute.xlu0 0
  %407 = vperm.xlu0 %406, %v357
  %v408 = vpop.permute.xlu0 %407
  %411 = vset.pattern.permute.xlu0 0
  %412 = vperm.xlu0 %411, %v358
  %v413 = vpop.permute.xlu0 %412
  %416 = vset.pattern.permute.xlu0 0
  %417 = vperm.xlu0 %416, %v359
  %v418 = vpop.permute.xlu0 %417
  %421 = vset.pattern.permute.xlu0 0
  %422 = vperm.xlu0 %421, %v360
  %v423 = vpop.permute.xlu0 %422
  %426 = vset.pattern.permute.xlu0 0
  %427 = vperm.xlu0 %426, %v361
  %v428 = vpop.permute.xlu0 %427
  %431 = vset.pattern.permute.xlu0 0
  %432 = vperm.xlu0 %431, %v362
  %v433 = vpop.permute.xlu0 %432
  %436 = vset.pattern.permute.xlu0 0
  %437 = vperm.xlu0 %436, %v363
  %v438 = vpop.permute.xlu0 %437
  %441 = vset.pattern.permute.xlu0 0
  %442 = vperm.xlu0 %441, %v364
  %v443 = vpop.permute.xlu0 %442
  %v461 = vunpack.c.l.b16 %v325
  %v462 = vunpack.c.l.b16 %v326
  %v463 = vunpack.c.l.b16 %v327
  %v464 = vunpack.c.l.b16 %v328
  %v465 = vunpack.c.l.b16 %v329
  %v466 = vunpack.c.l.b16 %v330
  %v467 = vunpack.c.l.b16 %v331
  %v468 = vunpack.c.l.b16 %v332
  %v469 = vunpack.c.l.b16 %v333
  %v470 = vunpack.c.l.b16 %v334
  %v471 = vunpack.c.l.b16 %v335
  %v472 = vunpack.c.l.b16 %v336
  %v473 = vunpack.c.l.b16 %v337
  %v474 = vunpack.c.l.b16 %v338
  %v475 = vunpack.c.l.b16 %v339
  %v476 = vunpack.c.l.b16 %v340
  %v477 = vpack.c.b16 %v462, %v461
  %v478 = vpack.c.b16 %v464, %v463
  %v479 = vpack.c.b16 %v466, %v465
  %v480 = vpack.c.b16 %v468, %v467
  %v481 = vpack.c.b16 %v470, %v469
  %v482 = vpack.c.b16 %v472, %v471
  %v483 = vpack.c.b16 %v474, %v473
  %v484 = vpack.c.b16 %v476, %v475
  %493 = vmatprep.subr.bf16.mxu0 0
  %494 = vmatpush1.bf16.msra.mxu0 %v341
  %495 = vmatprep.subr.bf16.mxu0 0
  %496 = vmatpush1.bf16.msra.mxu0 %v342
  %497 = vmatprep.subr.bf16.mxu0 0
  %498 = vmatpush1.bf16.msra.mxu0 %v343
  %499 = vmatprep.subr.bf16.mxu0 0
  %500 = vmatpush1.bf16.msra.mxu0 %v344
  %501 = vmatprep.subr.bf16.mxu0 0
  %502 = vmatpush1.bf16.msra.mxu0 %v345
  %503 = vmatprep.subr.bf16.mxu0 0
  %504 = vmatpush1.bf16.msra.mxu0 %v346
  %505 = vmatprep.subr.bf16.mxu0 0
  %506 = vmatpush1.bf16.msra.mxu0 %v347
  %507 = vmatprep.subr.bf16.mxu0 0
  %508 = vmatpush1.bf16.msra.mxu0 %v348
  %509 = vmatprep.subr.bf16.mxu0 0
  %510 = vmatpush1.bf16.msra.mxu0 0
  %511 = vmatprep.subr.bf16.mxu0 0
  %512 = vmatpush1.bf16.msra.mxu0 0
  %513 = vmatprep.subr.bf16.mxu0 0
  %514 = vmatpush1.bf16.msra.mxu0 0
  %515 = vmatprep.subr.bf16.mxu0 0
  %516 = vmatpush1.bf16.msra.mxu0 0
  %517 = vmatprep.subr.bf16.mxu0 0
  %518 = vmatpush1.bf16.msra.mxu0 0
  %519 = vmatprep.subr.bf16.mxu0 0
  %520 = vmatpush1.bf16.msra.mxu0 0
  %521 = vmatprep.subr.bf16.mxu0 0
  %522 = vmatpush1.bf16.msra.mxu0 0
  %523 = vmatprep.subr.bf16.mxu0 0
  %524 = vmatpush1.bf16.msra.mxu0 0
  %525 = vmatprep.mubr.bf16.mxu0 0
  %526 = vmatmul.mubr.bf16.gmra.mrb[0].mxu0 %v477
  %v527 = vpop.f32.mrb[0].mxu0
  %v528 = vadd.f32 %v368, %v527
  %v529 = vpop.f32.mrb[0].mxu0
  %v530 = vpop.f32.mrb[0].mxu0
  %v531 = vadd.f32 %v373, %v530
  %v532 = vpop.f32.mrb[0].mxu0
  %533 = vmatprep.mubr.bf16.mxu0 0
  %534 = vmatmul.mubr.bf16.gmra.mrb[0].mxu0 %v478
  %v535 = vpop.f32.mrb[0].mxu0
  %v536 = vadd.f32 %v378, %v535
  %v537 = vpop.f32.mrb[0].mxu0
  %v538 = vpop.f32.mrb[0].mxu0
  %v539 = vadd.f32 %v383, %v538
  %v540 = vpop.f32.mrb[0].mxu0
  %541 = vmatprep.mubr.bf16.mxu0 0
  %542 = vmatmul.mubr.bf16.gmra.mrb[0].mxu0 %v479
  %v543 = vpop.f32.mrb[0].mxu0
  %v544 = vadd.f32 %v388, %v543
  %v545 = vpop.f32.mrb[0].mxu0
  %v546 = vpop.f32.mrb[0].mxu0
  %v547 = vadd.f32 %v393, %v546
  %v548 = vpop.f32.mrb[0].mxu0
  %549 = vmatprep.mubr.bf16.mxu0 0
  %550 = vmatmul.mubr.bf16.gmra.mrb[0].mxu0 %v480
  %v551 = vpop.f32.mrb[0].mxu0
  %v552 = vadd.f32 %v398, %v551
  %v553 = vpop.f32.mrb[0].mxu0
  %v554 = vpop.f32.mrb[0].mxu0
  %v555 = vadd.f32 %v403, %v554
  %v556 = vpop.f32.mrb[0].mxu0
  %557 = vmatprep.mubr.bf16.mxu0 0
  %558 = vmatmul.mubr.bf16.gmra.mrb[0].mxu0 %v481
  %v559 = vpop.f32.mrb[0].mxu0
  %v560 = vadd.f32 %v408, %v559
  %v561 = vpop.f32.mrb[0].mxu0
  %v562 = vpop.f32.mrb[0].mxu0
  %v563 = vadd.f32 %v413, %v562
  %v564 = vpop.f32.mrb[0].mxu0
  %565 = vmatprep.mubr.bf16.mxu0 0
  %566 = vmatmul.mubr.bf16.gmra.mrb[0].mxu0 %v482
  %v567 = vpop.f32.mrb[0].mxu0
  %v568 = vadd.f32 %v418, %v567
  %v569 = vpop.f32.mrb[0].mxu0
  %v570 = vpop.f32.mrb[0].mxu0
  %v571 = vadd.f32 %v423, %v570
  %v572 = vpop.f32.mrb[0].mxu0
  %573 = vmatprep.mubr.bf16.mxu0 0
  %574 = vmatmul.mubr.bf16.gmra.mrb[0].mxu0 %v483
  %v575 = vpop.f32.mrb[0].mxu0
  %v576 = vadd.f32 %v428, %v575
  %v577 = vpop.f32.mrb[0].mxu0
  %v578 = vpop.f32.mrb[0].mxu0
  %v579 = vadd.f32 %v433, %v578
  %v580 = vpop.f32.mrb[0].mxu0
  %581 = vmatprep.mubr.bf16.mxu0 0
  %582 = vmatmul.mubr.bf16.gmra.mrb[0].mxu0 %v484
  %v583 = vpop.f32.mrb[0].mxu0
  %v584 = vadd.f32 %v438, %v583
  %v585 = vpop.f32.mrb[0].mxu0
  %v586 = vpop.f32.mrb[0].mxu0
  %v587 = vadd.f32 %v443, %v586
  %v588 = vpop.f32.mrb[0].mxu0
  %589 = vdwg.mxu0
  %v590 = vmax.f32 %v528, 0.0
  %v591 = vmax.f32 %v531, 0.0
  %v592 = vmax.f32 %v536, 0.0
  %v593 = vmax.f32 %v539, 0.0
  %v594 = vmax.f32 %v544, 0.0
  %v595 = vmax.f32 %v547, 0.0
  %v596 = vmax.f32 %v552, 0.0
  %v597 = vmax.f32 %v555, 0.0
  %v598 = vmax.f32 %v560, 0.0
  %v599 = vmax.f32 %v563, 0.0
  %v600 = vmax.f32 %v568, 0.0
  %v601 = vmax.f32 %v571, 0.0
  %v602 = vmax.f32 %v576, 0.0
  %v603 = vmax.f32 %v579, 0.0
  %v604 = vmax.f32 %v584, 0.0
  %v605 = vmax.f32 %v587, 0.0
  %v606 = vld [vmem:[%s5] sm:$0xf]
  %v607 = vpack.c.bf16 %v591, %v590
  %v608 = vpack.c.bf16 %v593, %v592
  %v609 = vpack.c.bf16 %v595, %v594
  %v610 = vpack.c.bf16 %v597, %v596
  %v611 = vpack.c.bf16 %v599, %v598
  %v612 = vpack.c.bf16 %v601, %v600
  %v613 = vpack.c.bf16 %v603, %v602
  %v614 = vpack.c.bf16 %v605, %v604
  %v615 = vld [vmem:[%s6] sm:$0xff]
  %617 = vset.pattern.permute.xlu0 0
  %618 = vperm.xlu0 %617, %v615
  %v619 = vpop.permute.xlu0 %618
  %621 = vmatprep.subr.bf16.mxu0 0
  %622 = vmatpush1.bf16.msra.mxu0 %v607
  %623 = vmatprep.subr.bf16.mxu0 0
  %624 = vmatpush1.bf16.msra.mxu0 %v608
  %625 = vmatprep.subr.bf16.mxu0 0
  %626 = vmatpush1.bf16.msra.mxu0 %v609
  %627 = vmatprep.subr.bf16.mxu0 0
  %628 = vmatpush1.bf16.msra.mxu0 %v610
  %629 = vmatprep.subr.bf16.mxu0 0
  %630 = vmatpush1.bf16.msra.mxu0 %v611
  %631 = vmatprep.subr.bf16.mxu0 0
  %632 = vmatpush1.bf16.msra.mxu0 %v612
  %633 = vmatprep.subr.bf16.mxu0 0
  %634 = vmatpush1.bf16.msra.mxu0 %v613
  %635 = vmatprep.subr.bf16.mxu0 0
  %636 = vmatpush1.bf16.msra.mxu0 %v614
  %637 = vmatprep.subr.bf16.mxu0 0
  %638 = vmatpush1.bf16.msra.mxu0 0
  %639 = vmatprep.subr.bf16.mxu0 0
  %640 = vmatpush1.bf16.msra.mxu0 0
  %641 = vmatprep.subr.bf16.mxu0 0
  %642 = vmatpush1.bf16.msra.mxu0 0
  %643 = vmatprep.subr.bf16.mxu0 0
  %644 = vmatpush1.bf16.msra.mxu0 0
  %645 = vmatprep.subr.bf16.mxu0 0
  %646 = vmatpush1.bf16.msra.mxu0 0
  %647 = vmatprep.subr.bf16.mxu0 0
  %648 = vmatpush1.bf16.msra.mxu0 0
  %649 = vmatprep.subr.bf16.mxu0 0
  %650 = vmatpush1.bf16.msra.mxu0 0
  %651 = vmatprep.subr.bf16.mxu0 0
  %652 = vmatpush1.bf16.msra.mxu0 0
  %653 = vmatprep.mubr.bf16.mxu0 0
  %654 = vmatmul.mubr.bf16.gmra.mrb[0].mxu0 %v606
  %v655 = vpop.f32.mrb[0].mxu0
  %v656 = vadd.f32 %v619, %v655
  %v657 = vpop.f32.mrb[0].mxu0
  %v658 = vpop.f32.mrb[0].mxu0
  %v659 = vpop.f32.mrb[0].mxu0
  %660 = vdwg.mxu0
  %v661 = vxor.u32 %v656, 2147483648
  %v662 = vmul.f32 %v661, 1.442695
  %v663 = vpow.pop %v662
  %v664 = vadd.f32 %v663, 1.0
  %v665 = vrcp.pop %v664
  %v666 = vmul.f32 1.0, %v665
  %v667 = vadd.f32 %v666, 1e-05
  %vm668 = vcmask 1040384
  %v669 = vsel %vm668, %v667, %v666
  %v670 = vsub.f32 1.0, %v666
  %v671 = vadd.f32 %v670, 1e-05
  %v672 = vsel %vm668, %v671, %v670
  %v673 = vlog2.pop %v669
  %v674 = vmul.f32 %v673, 0.6931472
  %v675 = vmax.f32 %v674, -100.0
  %v676 = vlog2.pop %v672
  %v677 = vmul.f32 %v676, 0.6931472
  %v678 = vmax.f32 %v677, -100.0
  %v680 = vrot.slane %v675, 7
  %v682 = vmul.f32 %v29, %v680
  %v683 = vsub.f32 1.0, %v29
  %v685 = vrot.slane %v678, 7
  %v687 = vmul.f32 %v683, %v685
  %v688 = vadd.f32 %v682, %v687
  %v689 = vsub.f32 0.0, %v688
  %v690 = vlaneseq
  %v691 = vshrl.u32 %v690, 7
  %v692 = vsub.s32 3, %v691
  %v693 = vrot.slane %v29, %v692
  %v694 = vmul.f32 %v693, %v689
  %695 = vst [vmem:[%s7] sm:$0x1] %v666
  %vm696 = vcmask 1042433
  %v697 = vsel %vm696, %v694, 0.0
  %698 = vadd.xlane.f32.xlu0 %v697
  %v699 = vpop.xlane.xlu0 %698
  %vm700 = vcmask 2049
  %701 = vst.msk [vmem:[%s8 - $0x1] sm:$0x6] %vm700, %v699
  // Predicated region
  $region30: #{enc_inf_3_c.1} parent=0 // pred_check
    _
  $region31: #{enc_inf_3_c.1} parent=0 // pred_check_branch
    %703 = sbr.rel (0) target = $region33
  $region32: #{enc_inf_3_c.1} parent=0 // pred_region
    _
  $region33: #{enc_inf_3_c.1} parent=0 // pred_fallthru
    _
  // Predicated region
  $region34: #{enc_inf_3_c.1} parent=0 // pred_check
    _
  $region35: #{enc_inf_3_c.1} parent=0 // pred_check_branch
    %705 = sbr.rel (0) target = $region37
  $region36: #{enc_inf_3_c.1} parent=0 // pred_region
    _
  $region37: #{enc_inf_3_c.1} parent=0 // pred_fallthru
    _
  // Predicated region
  $region38: #{enc_inf_3_c.1} parent=0 // pred_check
    _
  $region39: #{enc_inf_3_c.1} parent=0 // pred_check_branch
    %707 = sbr.rel (0) target = $region41
  $region40: #{enc_inf_3_c.1} parent=0 // pred_region
    _
  $region41: #{enc_inf_3_c.1} parent=0 // pred_fallthru
    _
  // Predicated region
  $region42: #{enc_inf_3_c.1} parent=0 // pred_check
    _
  $region43: #{enc_inf_3_c.1} parent=0 // pred_check_branch
    %709 = sbr.rel (0) target = $region45
  $region44: #{enc_inf_3_c.1} parent=0 // pred_region
    _
  $region45: #{enc_inf_3_c.1} parent=0 // pred_fallthru
    _

</llo_original>
